<compile_context>
chip_gen: v5e
topology: v5e:2x2
jax: 0.10.0
libtpu: 0.0.40
codegen_flags: <defaults>
</compile_context>

<pallas_src>
import functools
import math

import jax
import jax.numpy as jnp
from jax.experimental import pallas as pl
from jax.experimental.pallas import tpu as pltpu


_LANES = 128
_TARGET_STEP_BYTES = 6 * 1024 * 1024     # streamed logits+labels per grid step
_MAX_ROWS_PER_STEP = 4096                # bound kernel code size / temporaries


def _label_norm_loss_kernel(x_ref, lbl_ref, out_ref, acc_ref, *,
                            eta, hw, rows_per_step, n_inner, needs_mask):
    o = pl.program_id(1)                 # pixel chunk (parallel)
    i = pl.program_id(2)                 # pixel tile inside chunk (reduction)

    @pl.when(i == 0)
    def _():
        acc_ref[...] = jnp.zeros_like(acc_ref)

    num_classes = x_ref.shape[0]         # x_ref: (C, S, 128)
    on = jnp.float32(1.0 - eta)
    off = jnp.float32(eta / (num_classes - 1))

    lbl = lbl_ref[...].astype(jnp.int32)                      # (S, 128)

    # Channel max (exact in the native dtype), then work in f32.  Channels are
    # an outer dim, so all of this is per-pixel elementwise VPU work.
    m = x_ref[0]
    for c in range(1, num_classes):
        m = jnp.maximum(m, x_ref[c])
    m = m.astype(jnp.float32)                                 # (S, 128)

    zero = jnp.zeros(m.shape, jnp.float32)
    sum_exp = zero
    sum_z = zero
    z_lbl = zero
    for c in range(num_classes):
        zc = x_ref[c].astype(jnp.float32) - m                 # (S, 128)
        sum_exp = sum_exp + jnp.exp(zc)
        sum_z = sum_z + zc
        z_lbl = z_lbl + jnp.where(lbl == c, zc, 0.0)          # scalar-const cmp

    lse = jnp.log(sum_exp)
    # sum_c q*log_softmax == off*sum_z + (on-off)*z[label] - lse   (sum_c q == 1)
    ce = off * sum_z + (on - off) * z_lbl - lse               # (S, 128)

    if needs_mask:
        # Zero contributions from wrapper padding / out-of-range row tiles.
        rows = jax.lax.broadcasted_iota(jnp.int32, ce.shape, 0)
        lanes = jax.lax.broadcasted_iota(jnp.int32, ce.shape, 1)
        pix = ((o * n_inner + i) * rows_per_step + rows) * _LANES + lanes
        ce = jnp.where(pix < hw, ce, 0.0)

    acc_ref[...] += ce                   # cheap elementwise accumulation

    @pl.when(i == n_inner - 1)
    def _():
        # one cross-lane/sublane reduce + tiny store per (batch, chunk)
        out_ref[...] = jnp.sum(acc_ref[...]).reshape(1, 1)


def _round_down(x, m):
    return (x // m) * m


def _round_up(x, m):
    return -(-x // m) * m


def _vmem_budget_bytes():
    """Per-generation scoped-VMEM budget (headroom below physical VMEM)."""
    try:
        phys = pltpu.get_tpu_info().vmem_capacity_bytes
    except Exception:
        phys = 64 * 1024 * 1024          # assume the smallest (v7x-sized) VMEM
    # 128 MiB parts (v5e/v6e) -> 64 MiB scoped; 64 MiB parts (v7x) -> 40 MiB.
    return min(64 * 1024 * 1024, (phys * 5) // 8)


def _rows_per_step(n_rows, n_classes, x_item, l_item, batch, budget):
    """Rows of 128 pixels per grid step: large enough to amortize per-step
    pipeline overhead, small enough for the scoped-VMEM budget."""
    row_mult = max(8, 32 // x_item, 32 // l_item)   # sublane packing granule

    payload_row = _LANES * (n_classes * x_item + l_item)      # HBM bytes / row
    vmem_row = (2 * n_classes * _LANES * x_item               # logits, 2 bufs
                + 2 * _LANES * l_item                         # labels, 2 bufs
                + _LANES * 4                                  # accumulator
                + 10 * _LANES * 4)                            # compiler temps
    headroom = 4 * 1024 * 1024

    s = min(_TARGET_STEP_BYTES // payload_row,
            max(0, budget - headroom) // vmem_row,
            _MAX_ROWS_PER_STEP)
    s = max(row_mult, _round_down(s, row_mult))

    if n_rows <= s:
        s = n_rows                       # single full-extent tile (always legal)
        if batch == 1 and n_rows >= 2 * row_mult:
            # split so v7x's second TensorCore has work even when batch == 1
            s = _round_up(-(-n_rows // 2), row_mult)
    return s


def label_norm_loss(inputs, label, *, eta=0.0005):
    """inputs: (B, C, H, W) float logits; label: (B, H, W) integer class ids."""
    B, C, H, W = inputs.shape
    assert C >= 2, "need at least 2 classes (eta / (C - 1) undefined for C == 1)"
    HW = H * W
    n_rows = -(-HW // _LANES)
    hw_pad = n_rows * _LANES

    # Free reshapes; labels keep their native integer dtype (no extra HBM pass).
    x = inputs.reshape(B, C, HW)
    lbl = label.reshape(B, HW)
    if hw_pad != HW:
        # TODO(synk): fold the ragged tail into the kernel DMA instead of this
        # one-off pad copy (only hit when H*W is not a multiple of 128).
        x = jnp.pad(x, ((0, 0), (0, 0), (0, hw_pad - HW)))
        lbl = jnp.pad(lbl, ((0, 0), (0, hw_pad - HW)))
    x = x.reshape(B, C, n_rows, _LANES)
    lbl = lbl.reshape(B, n_rows, _LANES)

    x_item = jnp.dtype(x.dtype).itemsize
    l_item = jnp.dtype(lbl.dtype).itemsize
    budget = _vmem_budget_bytes()
    S = _rows_per_step(n_rows, C, x_item, l_item, B, budget)

    n_row_tiles = -(-n_rows // S)
    n_outer = 2 if (B < 4 and n_row_tiles >= 2 and n_row_tiles % 2 == 0) else 1
    n_inner = n_row_tiles // n_outer
    needs_mask = (n_outer * n_inner * S * _LANES != HW)

    kernel = functools.partial(
        _label_norm_loss_kernel, eta=eta, hw=HW, rows_per_step=S,
        n_inner=n_inner, needs_mask=needs_mask)

    cost = pl.CostEstimate(
        flops=int(8 * B * C * hw_pad),
        transcendentals=int(B * (C + 1) * hw_pad),
        bytes_accessed=int(B * C * hw_pad * x_item + B * hw_pad * l_item),
    )

    partial_ce = pl.pallas_call(
        kernel,
        out_shape=jax.ShapeDtypeStruct((B, n_outer, 1, 1), jnp.float32),
        grid_spec=pltpu.PrefetchScalarGridSpec(
            num_scalar_prefetch=0,
            grid=(B, n_outer, n_inner),
            in_specs=[
                pl.BlockSpec((None, C, S, _LANES),
                             lambda b, o, i: (b, 0, o * n_inner + i, 0)),
                pl.BlockSpec((None, S, _LANES),
                             lambda b, o, i: (b, o * n_inner + i, 0)),
            ],
            out_specs=pl.BlockSpec((None, None, 1, 1),
                                   lambda b, o, i: (b, o, 0, 0)),
            scratch_shapes=[pltpu.VMEM((S, _LANES), jnp.float32)],
        ),
        compiler_params=pltpu.CompilerParams(
            dimension_semantics=("parallel", "parallel", "arbitrary"),
            vmem_limit_bytes=int(budget)),
        cost_estimate=cost,
    )(x, lbl)

    # sum_c q*log(q) is pixel-independent -> compile-time constant.
    def _xlogx(v):
        return 0.0 if v <= 0.0 else v * math.log(v)

    const_self = _xlogx(1.0 - eta) + (C - 1) * _xlogx(eta / (C - 1))
    return jnp.float32(const_self) - jnp.sum(partial_ce) / jnp.float32(B * HW)


def label_norm_loss_ref(inputs, label, *, eta=0.0005):
    """Pure-JAX reference matching the PyTorch module."""
    B, C, H, W = inputs.shape
    one_hot = jax.nn.one_hot(label, C, axis=1, dtype=jnp.float32)  # (B, C, H, W)
    q = one_hot * (1.0 - eta - eta / (C - 1)) + eta / (C - 1)
    log_p = jax.nn.log_softmax(inputs.astype(jnp.float32), axis=1)
    self_info = jnp.nan_to_num(q * jnp.log(q))
    kl = self_info - q * log_p
    return kl.sum(axis=1).mean()


if __name__ == "__main__":
    B, C, H, W = 2, 4, 16, 16   # N_classes = 4
    key = jax.random.PRNGKey(0)
    k_x, k_l = jax.random.split(key)
    inputs = jax.random.normal(k_x, (B, C, H, W), dtype=jnp.float32)
    label = jax.random.randint(k_l, (B, H, W), 0, C, dtype=jnp.int32)

    loss = jax.block_until_ready(label_norm_loss(inputs, label))
    ref = jax.block_until_ready(label_norm_loss_ref(inputs, label))

    assert jnp.allclose(loss, ref, rtol=1e-5, atol=1e-5), (loss, ref)
    print("KERNEL_OK")
</pallas_src>

<mosaic_0001>
module attributes {stable_mosaic.version = 11 : i64} {
  func.func @_label_norm_loss_kernel(%arg0: i32, %arg1: i32, %arg2: i32, %arg3: memref<1x4x2x128xf32, #tpu.memory_space<vmem>>, %arg4: memref<1x2x128xi32, #tpu.memory_space<vmem>>, %arg5: memref<1x1x1x1xf32, #tpu.memory_space<vmem>>, %arg6: memref<2x128xf32, #tpu.memory_space<vmem>>) attributes {dimension_semantics = [#tpu.dimension_semantics<parallel>, #tpu.dimension_semantics<parallel>, #tpu.dimension_semantics<arbitrary>], iteration_bounds = array<i64: 2, 1, 1>, scalar_prefetch = 0 : i64, scratch_operands = 1 : i64, tpu.core_type = #tpu.core_type<tc>, window_params = [{transform_indices = @transform_0, window_bounds = array<i64: 1, 4, 2, 128>}, {transform_indices = @transform_1, window_bounds = array<i64: 1, 2, 128>}, {transform_indices = @transform_2, window_bounds = array<i64: 1, 1, 1, 1>}]} {
    %c0_i32 = arith.constant 0 : i32
    %0 = arith.cmpi eq, %arg2, %c0_i32 : i32
    %1 = arith.extui %0 : i1 to i32
    %c0_i32_0 = arith.constant 0 : i32
    %2 = arith.cmpi ne, %1, %c0_i32_0 : i32
    scf.if %2 {
      %cst_46 = arith.constant 0.000000e+00 : f32
      %75 = vector.broadcast %cst_46 : f32 to vector<2x128xf32>
      %c0_47 = arith.constant 0 : index
      %c0_48 = arith.constant 0 : index
      %76 = vector.load %arg6[%c0_47, %c0_48] : memref<2x128xf32, #tpu.memory_space<vmem>>, vector<2x128xf32>
      tpu.vector_store %arg6[%c0_47, %c0_48], %75 {strides = array<i32>} : memref<2x128xf32, #tpu.memory_space<vmem>>, vector<2x128xf32>,
    } else {
    }
    %c0 = arith.constant 0 : index
    %c0_1 = arith.constant 0 : index
    %c0_2 = arith.constant 0 : index
    %3 = vector.load %arg4[%c0, %c0_1, %c0_2] : memref<1x2x128xi32, #tpu.memory_space<vmem>>, vector<1x2x128xi32>
    %4 = vector.shape_cast %3 : vector<1x2x128xi32> to vector<2x128xi32>
    %c0_3 = arith.constant 0 : index
    %c0_4 = arith.constant 0 : index
    %c0_5 = arith.constant 0 : index
    %c0_6 = arith.constant 0 : index
    %5 = vector.load %arg3[%c0_3, %c0_4, %c0_5, %c0_6] : memref<1x4x2x128xf32, #tpu.memory_space<vmem>>, vector<1x1x2x128xf32>
    %6 = vector.shape_cast %5 : vector<1x1x2x128xf32> to vector<2x128xf32>
    %c0_7 = arith.constant 0 : index
    %c1 = arith.constant 1 : index
    %c0_8 = arith.constant 0 : index
    %c0_9 = arith.constant 0 : index
    %7 = vector.load %arg3[%c0_7, %c1, %c0_8, %c0_9] : memref<1x4x2x128xf32, #tpu.memory_space<vmem>>, vector<1x1x2x128xf32>
    %8 = vector.shape_cast %7 : vector<1x1x2x128xf32> to vector<2x128xf32>
    %9 = arith.maximumf %6, %8 : vector<2x128xf32>
    %c0_10 = arith.constant 0 : index
    %c2 = arith.constant 2 : index
    %c0_11 = arith.constant 0 : index
    %c0_12 = arith.constant 0 : index
    %10 = vector.load %arg3[%c0_10, %c2, %c0_11, %c0_12] : memref<1x4x2x128xf32, #tpu.memory_space<vmem>>, vector<1x1x2x128xf32>
    %11 = vector.shape_cast %10 : vector<1x1x2x128xf32> to vector<2x128xf32>
    %12 = arith.maximumf %9, %11 : vector<2x128xf32>
    %c0_13 = arith.constant 0 : index
    %c3 = arith.constant 3 : index
    %c0_14 = arith.constant 0 : index
    %c0_15 = arith.constant 0 : index
    %13 = vector.load %arg3[%c0_13, %c3, %c0_14, %c0_15] : memref<1x4x2x128xf32, #tpu.memory_space<vmem>>, vector<1x1x2x128xf32>
    %14 = vector.shape_cast %13 : vector<1x1x2x128xf32> to vector<2x128xf32>
    %15 = arith.maximumf %12, %14 : vector<2x128xf32>
    %cst = arith.constant 0.000000e+00 : f32
    %16 = vector.broadcast %cst : f32 to vector<2x128xf32>
    %c0_16 = arith.constant 0 : index
    %c0_17 = arith.constant 0 : index
    %c0_18 = arith.constant 0 : index
    %c0_19 = arith.constant 0 : index
    %17 = vector.load %arg3[%c0_16, %c0_17, %c0_18, %c0_19] : memref<1x4x2x128xf32, #tpu.memory_space<vmem>>, vector<1x1x2x128xf32>
    %18 = vector.shape_cast %17 : vector<1x1x2x128xf32> to vector<2x128xf32>
    %19 = arith.subf %18, %15 : vector<2x128xf32>
    %20 = math.exp %19 : vector<2x128xf32>
    %21 = arith.addf %16, %20 : vector<2x128xf32>
    %22 = arith.addf %16, %19 : vector<2x128xf32>
    %c0_i32_20 = arith.constant 0 : i32
    %23 = vector.broadcast %c0_i32_20 : i32 to vector<2x128xi32>
    %24 = arith.cmpi eq, %4, %23 : vector<2x128xi32>
    %cst_21 = arith.constant 0.000000e+00 : f32
    %25 = vector.broadcast %cst_21 : f32 to vector<2x128xf32>
    %26 = arith.select %24, %19, %25 : vector<2x128xi1>, vector<2x128xf32>
    %27 = arith.addf %16, %26 : vector<2x128xf32>
    %c0_22 = arith.constant 0 : index
    %c1_23 = arith.constant 1 : index
    %c0_24 = arith.constant 0 : index
    %c0_25 = arith.constant 0 : index
    %28 = vector.load %arg3[%c0_22, %c1_23, %c0_24, %c0_25] : memref<1x4x2x128xf32, #tpu.memory_space<vmem>>, vector<1x1x2x128xf32>
    %29 = vector.shape_cast %28 : vector<1x1x2x128xf32> to vector<2x128xf32>
    %30 = arith.subf %29, %15 : vector<2x128xf32>
    %31 = math.exp %30 : vector<2x128xf32>
    %32 = arith.addf %21, %31 : vector<2x128xf32>
    %33 = arith.addf %22, %30 : vector<2x128xf32>
    %c1_i32 = arith.constant 1 : i32
    %34 = vector.broadcast %c1_i32 : i32 to vector<2x128xi32>
    %35 = arith.cmpi eq, %4, %34 : vector<2x128xi32>
    %cst_26 = arith.constant 0.000000e+00 : f32
    %36 = vector.broadcast %cst_26 : f32 to vector<2x128xf32>
    %37 = arith.select %35, %30, %36 : vector<2x128xi1>, vector<2x128xf32>
    %38 = arith.addf %27, %37 : vector<2x128xf32>
    %c0_27 = arith.constant 0 : index
    %c2_28 = arith.constant 2 : index
    %c0_29 = arith.constant 0 : index
    %c0_30 = arith.constant 0 : index
    %39 = vector.load %arg3[%c0_27, %c2_28, %c0_29, %c0_30] : memref<1x4x2x128xf32, #tpu.memory_space<vmem>>, vector<1x1x2x128xf32>
    %40 = vector.shape_cast %39 : vector<1x1x2x128xf32> to vector<2x128xf32>
    %41 = arith.subf %40, %15 : vector<2x128xf32>
    %42 = math.exp %41 : vector<2x128xf32>
    %43 = arith.addf %32, %42 : vector<2x128xf32>
    %44 = arith.addf %33, %41 : vector<2x128xf32>
    %c2_i32 = arith.constant 2 : i32
    %45 = vector.broadcast %c2_i32 : i32 to vector<2x128xi32>
    %46 = arith.cmpi eq, %4, %45 : vector<2x128xi32>
    %cst_31 = arith.constant 0.000000e+00 : f32
    %47 = vector.broadcast %cst_31 : f32 to vector<2x128xf32>
    %48 = arith.select %46, %41, %47 : vector<2x128xi1>, vector<2x128xf32>
    %49 = arith.addf %38, %48 : vector<2x128xf32>
    %c0_32 = arith.constant 0 : index
    %c3_33 = arith.constant 3 : index
    %c0_34 = arith.constant 0 : index
    %c0_35 = arith.constant 0 : index
    %50 = vector.load %arg3[%c0_32, %c3_33, %c0_34, %c0_35] : memref<1x4x2x128xf32, #tpu.memory_space<vmem>>, vector<1x1x2x128xf32>
    %51 = vector.shape_cast %50 : vector<1x1x2x128xf32> to vector<2x128xf32>
    %52 = arith.subf %51, %15 : vector<2x128xf32>
    %53 = math.exp %52 : vector<2x128xf32>
    %54 = arith.addf %43, %53 : vector<2x128xf32>
    %55 = arith.addf %44, %52 : vector<2x128xf32>
    %c3_i32 = arith.constant 3 : i32
    %56 = vector.broadcast %c3_i32 : i32 to vector<2x128xi32>
    %57 = arith.cmpi eq, %4, %56 : vector<2x128xi32>
    %cst_36 = arith.constant 0.000000e+00 : f32
    %58 = vector.broadcast %cst_36 : f32 to vector<2x128xf32>
    %59 = arith.select %57, %52, %58 : vector<2x128xi1>, vector<2x128xf32>
    %60 = arith.addf %49, %59 : vector<2x128xf32>
    %61 = math.log %54 : vector<2x128xf32>
    %cst_37 = arith.constant 1.66666665E-4 : f32
    %62 = vector.broadcast %cst_37 : f32 to vector<2x128xf32>
    %63 = arith.mulf %62, %55 : vector<2x128xf32>
    %cst_38 = arith.constant 0.999499976 : f32
    %cst_39 = arith.constant 1.66666665E-4 : f32
    %64 = arith.subf %cst_38, %cst_39 : f32
    %65 = vector.broadcast %64 : f32 to vector<2x128xf32>
    %66 = arith.mulf %65, %60 : vector<2x128xf32>
    %67 = arith.addf %63, %66 : vector<2x128xf32>
    %68 = arith.subf %67, %61 : vector<2x128xf32>
    %c0_40 = arith.constant 0 : index
    %c0_41 = arith.constant 0 : index
    %69 = vector.load %arg6[%c0_40, %c0_41] : memref<2x128xf32, #tpu.memory_space<vmem>>, vector<2x128xf32>
    %70 = arith.addf %69, %68 : vector<2x128xf32>
    %c0_42 = arith.constant 0 : index
    %c0_43 = arith.constant 0 : index
    %71 = vector.load %arg6[%c0_42, %c0_43] : memref<2x128xf32, #tpu.memory_space<vmem>>, vector<2x128xf32>
    tpu.vector_store %arg6[%c0_42, %c0_43], %70 {strides = array<i32>} : memref<2x128xf32, #tpu.memory_space<vmem>>, vector<2x128xf32>,
    %c0_i32_44 = arith.constant 0 : i32
    %72 = arith.cmpi eq, %arg2, %c0_i32_44 : i32
    %73 = arith.extui %72 : i1 to i32
    %c0_i32_45 = arith.constant 0 : i32
    %74 = arith.cmpi ne, %73, %c0_i32_45 : i32
    scf.if %74 {
      %c0_46 = arith.constant 0 : index
      %c0_47 = arith.constant 0 : index
      %75 = vector.load %arg6[%c0_46, %c0_47] : memref<2x128xf32, #tpu.memory_space<vmem>>, vector<2x128xf32>
      %76 = vector.shape_cast %75 : vector<2x128xf32> to vector<1x2x128xf32>
      %cst_48 = arith.constant dense<0.000000e+00> : vector<1xf32>
      %77 = vector.multi_reduction <add>, %76, %cst_48 [1, 2] : vector<1x2x128xf32> to vector<1xf32>
      %78 = vector.shape_cast %77 : vector<1xf32> to vector<1x1x1xf32>
      %79 = vector.extract %78[0, 0, 0] : f32 from vector<1x1x1xf32>
      %80 = vector.broadcast %79 : f32 to vector<1x1xf32>
      %c0_49 = arith.constant 0 : index
      %c0_50 = arith.constant 0 : index
      %c0_51 = arith.constant 0 : index
      %c0_52 = arith.constant 0 : index
      %81 = vector.load %arg5[%c0_49, %c0_50, %c0_51, %c0_52] : memref<1x1x1x1xf32, #tpu.memory_space<vmem>>, vector<1x1x1x1xf32>
      %82 = vector.shape_cast %81 : vector<1x1x1x1xf32> to vector<1x1xf32>
      %83 = vector.shape_cast %80 : vector<1x1xf32> to vector<1x1x1x1xf32>
      tpu.vector_store %arg5[%c0_49, %c0_50, %c0_51, %c0_52], %83 {strides = array<i32>} : memref<1x1x1x1xf32, #tpu.memory_space<vmem>>, vector<1x1x1x1xf32>,
    } else {
    }
    return
  }
  func.func @transform_0(%arg0: i32, %arg1: i32, %arg2: i32) -> (i32, i32, i32, i32) {
    %c1_i32 = arith.constant 1 : i32
    %0 = arith.muli %arg1, %c1_i32 : i32
    %1 = arith.addi %0, %arg2 : i32
    %c0_i32 = arith.constant 0 : i32
    %c0_i32_0 = arith.constant 0 : i32
    %c0_i32_1 = arith.constant 0 : i32
    return %arg0, %c0_i32, %1, %c0_i32_0 : i32, i32, i32, i32
  }
  func.func @transform_1(%arg0: i32, %arg1: i32, %arg2: i32) -> (i32, i32, i32) {
    %c1_i32 = arith.constant 1 : i32
    %0 = arith.muli %arg1, %c1_i32 : i32
    %1 = arith.addi %0, %arg2 : i32
    %c0_i32 = arith.constant 0 : i32
    %c0_i32_0 = arith.constant 0 : i32
    return %arg0, %1, %c0_i32 : i32, i32, i32
  }
  func.func @transform_2(%arg0: i32, %arg1: i32, %arg2: i32) -> (i32, i32, i32, i32) {
    %c0_i32 = arith.constant 0 : i32
    %c0_i32_0 = arith.constant 0 : i32
    %c0_i32_1 = arith.constant 0 : i32
    return %arg0, %arg1, %c0_i32, %c0_i32_0 : i32, i32, i32, i32
  }
}

</mosaic_0001>

<llo_original>
// kernel: tpu_custom_call.1
$region0: #{tpu_custom_call.1}
  #allocation0 [shape = 'u32[]', space=smem, size = 0x4, offset = 0x4, fixed_abs, tag = 'smem constant byte address 0x4 - core index']
  #allocation1 [shape = 'u32[72,128]{1,0:T(1,128)}', space=vmem, size = 0x9000, scoped, tag = 'internal scratch']
  #allocation2 [shape = 'f32[2,128]{1,0:T(2,128)}', space=vmem, size = 0x400, scoped, tag = 'scratch operand']
  %s0 = inlined_call_operand.hbm [shape: f32[2,4,2,128], index: 0, kind: input, shape index: {}]
  %s1 = inlined_call_operand.hbm [shape: s32[2,2,128], index: 1, kind: input, shape index: {}]
  %s2 = inlined_call_operand.vmem [shape: f32[2,1,1,1], index: 2, kind: output, shape index: {}]
  %s3 = sld [smem:[#allocation0]]
  $region57: #{tpu_custom_call.1} parent=0
    _
  %s5 = ssub.s32 1, %s3
  %s6 = scalar_select 0, %s5, %s3
  $region1: #{tpu_custom_call.1} parent=0
    #allocation3 [shape = 'u8[8192]{0}', space=vmem, size = 0x2000, scoped, tag = 'input window, operand 0']
    #allocation4 [shape = 's32[2]{0}', space=sflag, size = 0x8, scoped, tag = 'scoped memory for tpu_custom_call.1']
    #allocation5 [shape = 'u8[2048]{0}', space=vmem, size = 0x800, scoped, tag = 'input window, operand 1']
    #allocation6 [shape = 's32[2]{0}', space=sflag, size = 0x8, scoped, tag = 'scoped memory for tpu_custom_call.1']
    %7 = vsyncpa [#allocation4], 0
    %s8 = scalar_lea.sflag [#allocation4], 1
    %9 = vsyncpa %s8, 0
    %10 = vsyncpa [#allocation6], 0
    %s11 = scalar_lea.sflag [#allocation6], 1
    %12 = vsyncpa %s11, 0
    loop: start=0, step=1, limit=4
    $region2: #{tpu_custom_call.1} parent=1 // loop_pre_header
      _
    $region3: #{tpu_custom_call.1} parent=1 // loop_header
      %s14 = sphi 0, %s18
      %p15 = scmp.ge.s32.totalorder %s14, 4
      %s21 = sphi 0, %s40
      %s22 = sphi 0, %s36
      %s23 = sphi 0, %s32
      %s24 = sphi 0, %s21
      %s25 = sphi 0, %s22
      %s26 = sphi 0, %s23
      %s27 = sphi 0, %s24
      %s28 = sphi 0, %s25
      %s29 = sphi 0, %s26
      %s47 = sphi 0, %s49
      %s50 = sphi 0, %s47
      %s51 = sphi 0, %s50
      %s67 = sphi 0, %s51
      %s77 = sphi 0, %s79
      %s80 = sphi 0, %s77
      %s81 = sphi 0, %s80
      %s97 = sphi 0, %s81
      %s105 = sphi 0, %s107
      %s108 = sphi 0, %s105
      %s109 = sphi 0, %s108
      %s125 = sphi 0, %s109
    $region4: #{tpu_custom_call.1} parent=1 // loop_header_branch
      %17 = sbr.rel (%p15) target = $region8
    $region5: #{tpu_custom_call.1} parent=1 // loop_body
      %s19 = ssub.s32 %s14, 1
      %s20 = ssub.s32 %s14, 2
      %s30 = sadd.s32 1, %s23
      %p31 = scmp.ge.s32.totalorder %s30, 1
      %s32 = scalar_select %p31, 0, %s30
      %s33 = sadd.s32 1, %s22
      %s34 = scalar_select %p31, %s33, %s22
      %p35 = scmp.ge.s32.totalorder %s34, 1
      %s36 = scalar_select %p35, 0, %s34
      %s37 = sadd.s32 1, %s21
      %s38 = scalar_select %p35, %s37, %s21
      %p39 = scmp.ge.s32.totalorder %s38, 2
      %s40 = scalar_select %p39, 0, %s38
      %s41 = sadd.s32 %s22, %s23
      %s42 = sadd.s32 %s36, %s32
      %s43 = ssub.s32 %s21, %s40
      %s44 = ssub.s32 %s41, %s42
      %s45 = sor.u32 %s43, %s44
      %p46 = scmp.eq.s32.totalorder %s45, 0
      %s48 = sadd.s32 %s47, 1
      %s49 = scalar_select %p46, %s47, %s48
      %p52 = pneg %p46
      %p53 = scmp.eq.s32.totalorder %s14, 1
      %p54 = por %p52, %p53
      %p55 = scmp.ne.s32.totalorder %s47, %s50
      %p56 = scmp.eq.s32.totalorder %s14, 0
      %p57 = por %p55, %p56
      %p58 = scmp.ne.s32.totalorder %s47, %s50
      %p59 = scmp.eq.s32.totalorder %s19, 1
      %p60 = por %p58, %p59
      %p61 = scmp.ne.s32.totalorder %s50, %s51
      %p62 = scmp.eq.s32.totalorder %s19, 0
      %p63 = por %p61, %p62
      %p64 = scmp.ne.s32.totalorder %s50, %s51
      %p65 = scmp.eq.s32.totalorder %s20, 1
      %p66 = por %p64, %p65
      %p68 = scmp.ne.s32.totalorder %s51, %s67
      %p69 = scmp.eq.s32.totalorder %s20, 0
      %p70 = por %p68, %p69
      %s71 = sadd.s32 %s22, %s23
      %s72 = sadd.s32 %s36, %s32
      %s73 = ssub.s32 %s21, %s40
      %s74 = ssub.s32 %s71, %s72
      %s75 = sor.u32 %s73, %s74
      %p76 = scmp.eq.s32.totalorder %s75, 0
      %s78 = sadd.s32 %s77, 1
      %s79 = scalar_select %p76, %s77, %s78
      %p82 = pneg %p76
      %p83 = scmp.eq.s32.totalorder %s14, 1
      %p84 = por %p82, %p83
      %p85 = scmp.ne.s32.totalorder %s77, %s80
      %p86 = scmp.eq.s32.totalorder %s14, 0
      %p87 = por %p85, %p86
      %p88 = scmp.ne.s32.totalorder %s77, %s80
      %p89 = scmp.eq.s32.totalorder %s19, 1
      %p90 = por %p88, %p89
      %p91 = scmp.ne.s32.totalorder %s80, %s81
      %p92 = scmp.eq.s32.totalorder %s19, 0
      %p93 = por %p91, %p92
      %p94 = scmp.ne.s32.totalorder %s80, %s81
      %p95 = scmp.eq.s32.totalorder %s20, 1
      %p96 = por %p94, %p95
      %p98 = scmp.ne.s32.totalorder %s81, %s97
      %p99 = scmp.eq.s32.totalorder %s20, 0
      %p100 = por %p98, %p99
      %s101 = ssub.s32 %s21, %s40
      %s102 = ssub.s32 %s22, %s36
      %s103 = sor.u32 %s101, %s102
      %p104 = scmp.eq.s32.totalorder %s103, 0
      %s106 = sadd.s32 %s105, 1
      %s107 = scalar_select %p104, %s105, %s106
      %p110 = pneg %p104
      %p111 = scmp.eq.s32.totalorder %s14, 1
      %p112 = por %p110, %p111
      %p113 = scmp.ne.s32.totalorder %s105, %s108
      %p114 = scmp.eq.s32.totalorder %s14, 0
      %p115 = por %p113, %p114
      %p116 = scmp.ne.s32.totalorder %s105, %s108
      %p117 = scmp.eq.s32.totalorder %s19, 1
      %p118 = por %p116, %p117
      %p119 = scmp.ne.s32.totalorder %s108, %s109
      %p120 = scmp.eq.s32.totalorder %s19, 0
      %p121 = por %p119, %p120
      %p122 = scmp.ne.s32.totalorder %s108, %s109
      %p123 = scmp.eq.s32.totalorder %s20, 1
      %p124 = por %p122, %p123
      %p126 = scmp.ne.s32.totalorder %s109, %s125
      %p127 = scmp.eq.s32.totalorder %s20, 0
      %p128 = por %p126, %p127
      %p129 = scmp.le.s32.totalorder 1, %s14
      %p130 = scmp.lt.s32.totalorder %s14, 3
      %p131 = pnand %p129, %p130
      %p132 = pneg %p131
      // Predicated region
      $region9: #{tpu_custom_call.1} parent=5 // pred_check
        _
      $region10: #{tpu_custom_call.1} parent=5 // pred_check_branch
        %134 = sbr.rel (%p131) target = $region12
      $region11: #{tpu_custom_call.1} parent=5 // pred_region
        %s135 = ssub.s32 %s14, 1
      $region12: #{tpu_custom_call.1} parent=5 // pred_fallthru
        _
      %p136 = scmp.lt.s32.totalorder %s14, 2
      // Predicated region
      $region13: #{tpu_custom_call.1} parent=5 // pred_check
        %p137 = pneg %p136
      $region14: #{tpu_custom_call.1} parent=5 // pred_check_branch
        %139 = sbr.rel (%p137) target = $region16
      $region15: #{tpu_custom_call.1} parent=5 // pred_region
        // Predicated region
        $region17: #{tpu_custom_call.1} parent=15 // pred_check
          %p140 = pneg %p57
        $region18: #{tpu_custom_call.1} parent=15 // pred_check_branch
          %142 = sbr.rel (%p140) target = $region20
        $region19: #{tpu_custom_call.1} parent=15 // pred_region
          %s143 = sand.u32 %s47, 1
          %s144 = scalar_lea.sflag [#allocation4], %s143
          %s145 = sand.u32 %s47, 1
          %s146 = smul.addr %s145, 8
          %s147 = scalar_lea.vmem [#allocation3], %s146
          %s148 = sadd.s32 %s22, %s23
          %150 = vsyncadd %s144, 0
          %s151 = smul.addr %s21, 4
          %s152 = sadd.s32 %s148, %s151
          %s153 = smul.addr %s152, 2
          %s154 = scalar_lea.hbm %s0, %s153
          %s155 = sshll.u32 %s154, 4
          %s156 = int_to_ptr.hbm [resolvable:$true] %s155
          %s157 = sshll.u32 %s147, 4
          %s158 = int_to_ptr.vmem [resolvable:$true] %s157
          %163 = dma.hbm_to_vmem [thread:$0]  %s156, 128, %s158, %s144, 32, 32, 2
        $region20: #{tpu_custom_call.1} parent=15 // pred_fallthru
          _
        // Predicated region
        $region21: #{tpu_custom_call.1} parent=15 // pred_check
          %p164 = pneg %p87
        $region22: #{tpu_custom_call.1} parent=15 // pred_check_branch
          %166 = sbr.rel (%p164) target = $region24
        $region23: #{tpu_custom_call.1} parent=15 // pred_region
          %s167 = sand.u32 %s77, 1
          %s168 = scalar_lea.sflag [#allocation6], %s167
          %s169 = sand.u32 %s77, 1
          %s170 = smul.addr %s169, 2
          %s171 = scalar_lea.vmem [#allocation5], %s170
          %s172 = sadd.s32 %s22, %s23
          %174 = vsyncadd %s168, 0
          %s175 = sadd.s32 %s172, %s21
          %s176 = smul.addr %s175, 2
          %s177 = scalar_lea.hbm %s1, %s176
          %s179 = sshll.u32 %s177, 4
          %s180 = int_to_ptr.hbm [resolvable:$true] %s179
          %s181 = sshll.u32 %s171, 4
          %s182 = int_to_ptr.vmem [resolvable:$true] %s181
          %184 = dma.hbm_to_vmem [thread:$0]  %s180, 32, %s182, %s168
        $region24: #{tpu_custom_call.1} parent=15 // pred_fallthru
          _
      $region16: #{tpu_custom_call.1} parent=5 // pred_fallthru
        _
      %p185 = scmp.le.s32.totalorder 1, %s14
      %p186 = scmp.lt.s32.totalorder %s14, 3
      %p187 = pnand %p185, %p186
      %p188 = pneg %p187
      // Predicated region
      $region25: #{tpu_custom_call.1} parent=5 // pred_check
        _
      $region26: #{tpu_custom_call.1} parent=5 // pred_check_branch
        %190 = sbr.rel (%p187) target = $region28
      $region27: #{tpu_custom_call.1} parent=5 // pred_region
        %s191 = ssub.s32 %s14, 1
        %s192 = sand.u32 %s50, 1
        %s193 = scalar_lea.sflag [#allocation4], %s192
        %s194 = sand.u32 %s50, 1
        %s195 = smul.addr %s194, 8
        %s196 = scalar_lea.vmem [#allocation3], %s195
        // Predicated region
        $region29: #{tpu_custom_call.1} parent=27 // pred_check
          %p197 = pneg %p63
        $region30: #{tpu_custom_call.1} parent=27 // pred_check_branch
          %199 = sbr.rel (%p197) target = $region32
        $region31: #{tpu_custom_call.1} parent=27 // pred_region
          %201 = dma.done %s193, 128
        $region32: #{tpu_custom_call.1} parent=27 // pred_fallthru
          _
        %s202 = sand.u32 %s80, 1
        %s203 = scalar_lea.sflag [#allocation6], %s202
        %s204 = sand.u32 %s80, 1
        %s205 = smul.addr %s204, 2
        %s206 = scalar_lea.vmem [#allocation5], %s205
        // Predicated region
        $region33: #{tpu_custom_call.1} parent=27 // pred_check
          %p207 = pneg %p93
        $region34: #{tpu_custom_call.1} parent=27 // pred_check_branch
          %209 = sbr.rel (%p207) target = $region36
        $region35: #{tpu_custom_call.1} parent=27 // pred_region
          %211 = dma.done %s203, 32
        $region36: #{tpu_custom_call.1} parent=27 // pred_fallthru
          _
        %s212 = sand.u32 %s50, 1
        %s213 = scalar_lea.sflag [#allocation4], %s212
        %s214 = sand.u32 %s50, 1
        %s215 = smul.addr %s214, 8
        %s216 = scalar_lea.vmem [#allocation3], %s215
        %p217 = pneg %p63
        %p218 = pneg %p60
        %s219 = sand.u32 %s80, 1
        %s220 = scalar_lea.sflag [#allocation6], %s219
        %s221 = sand.u32 %s80, 1
        %s222 = smul.addr %s221, 2
        %s223 = scalar_lea.vmem [#allocation5], %s222
        %p224 = pneg %p93
        %p225 = pneg %p90
        %p226 = pneg %p121
        %p227 = pneg %p118
        %p228 = scmp.lt.s32.totalorder %s24, 1
        %s229 = scalar_select %p228, %s24, 1
        %p230 = scmp.lt.s32.totalorder %s25, 0
        %s231 = scalar_select %p230, %s25, 0
        %s232 = sadd.s32 %s231, %s229
        %s233 = scalar_lea.vmem %s2, %s232
        %s234 = sadd.s32 %s25, %s26
        %s235 = sadd.s32 %s25, %s26
        %p236 = scmp.lt.s32.totalorder %s24, 1
        %s237 = scalar_select %p236, %s24, 1
        %p238 = scmp.lt.s32.totalorder %s25, 0
        %s239 = scalar_select %p238, %s25, 0
        %s240 = sadd.s32 %s239, %s237
        %s241 = scalar_lea.vmem %s2, %s240
        %p242 = scmp.eq.s32.totalorder %s26, 0
        // Predicated region
        $region37: #{tpu_custom_call.1} parent=27 // pred_check
          %p243 = pneg %p242
        $region38: #{tpu_custom_call.1} parent=27 // pred_check_branch
          %245 = sbr.rel (%p243) target = $region40
        $region39: #{tpu_custom_call.1} parent=27 // pred_region
          %246 = vst [vmem:[#allocation2] sm:$0x3] 0.0
        $region40: #{tpu_custom_call.1} parent=27 // pred_fallthru
          _
        %v247 = vld [vmem:[%s206] sm:$0x3]
        %v248 = vld [vmem:[%s196] sm:$0x3]
        %s249 = scalar_lea.vmem %s196, 2 [#allocation3]
        %v250 = vld [vmem:[%s249] sm:$0x3]
        %v251 = vmax.f32 %v248, %v250
        %s252 = scalar_lea.vmem %s196, 4 [#allocation3]
        %v253 = vld [vmem:[%s252] sm:$0x3]
        %v254 = vmax.f32 %v251, %v253
        %s255 = scalar_lea.vmem %s196, 6 [#allocation3]
        %v256 = vld [vmem:[%s255] sm:$0x3]
        %v257 = vmax.f32 %v254, %v256
        %v258 = vsub.f32 %v248, %v257
        %v259 = vmul.f32 %v258, 1.442695
        %v260 = vpow.pop %v259
        %v261 = vadd.f32 %v260, 0.0
        %v262 = vadd.f32 %v258, 0.0
        %vm263 = vcmp.eq.s32.totalorder %v247, 0
        %v264 = vsel %vm263, %v258, 0.0
        %v265 = vadd.f32 %v264, 0.0
        %v266 = vsub.f32 %v250, %v257
        %v267 = vmul.f32 %v266, 1.442695
        %v268 = vpow.pop %v267
        %v269 = vadd.f32 %v261, %v268
        %v270 = vadd.f32 %v262, %v266
        %vm271 = vcmp.eq.s32.totalorder %v247, 1
        %v272 = vsel %vm271, %v266, 0.0
        %v273 = vadd.f32 %v265, %v272
        %v274 = vsub.f32 %v253, %v257
        %v275 = vmul.f32 %v274, 1.442695
        %v276 = vpow.pop %v275
        %v277 = vadd.f32 %v269, %v276
        %v278 = vadd.f32 %v270, %v274
        %vm279 = vcmp.eq.s32.totalorder %v247, 2
        %v280 = vsel %vm279, %v274, 0.0
        %v281 = vadd.f32 %v273, %v280
        %v282 = vsub.f32 %v256, %v257
        %v283 = vmul.f32 %v282, 1.442695
        %v284 = vpow.pop %v283
        %v285 = vadd.f32 %v277, %v284
        %v286 = vadd.f32 %v278, %v282
        %vm287 = vcmp.eq.s32.totalorder %v247, 3
        %v288 = vsel %vm287, %v282, 0.0
        %v289 = vadd.f32 %v281, %v288
        %v290 = vlog2.pop %v285
        %v291 = vmul.f32 %v290, 0.6931472
        %v292 = vmul.f32 %v286, 0.00016666666
        %v293 = vmul.f32 %v289, 0.9993333
        %v294 = vadd.f32 %v292, %v293
        %v295 = vsub.f32 %v294, %v291
        %v296 = vld [vmem:[#allocation2] sm:$0x3]
        %v297 = vadd.f32 %v296, %v295
        %298 = vst [vmem:[#allocation2] sm:$0x3] %v297
        // Predicated region
        $region41: #{tpu_custom_call.1} parent=27 // pred_check
          %p299 = pneg %p242
        $region42: #{tpu_custom_call.1} parent=27 // pred_check_branch
          %301 = sbr.rel (%p299) target = $region44
        $region43: #{tpu_custom_call.1} parent=27 // pred_region
          %v302 = vld [vmem:[#allocation2] sm:$0x3]
          %vm303 = vcmask 1041408
          %v304 = vsel %vm303, %v302, 0.0
          %305 = vadd.xlane.f32.xlu0 %v304
          %v306 = vpop.xlane.xlu0 %305
          %v307 = vrot.slane %v306, 4
          %v308 = vadd.f32 %v306, %v307
          %v309 = vrot.slane %v308, 2
          %v310 = vadd.f32 %v308, %v309
          %v311 = vrot.slane %v310, 1
          %v312 = vadd.f32 %v310, %v311
          %s313 = vtos %v312
          %v314 = vstv %s313
          %vm315 = vcmask 0
          %316 = vst.msk [vmem:[%s241] sm:$0x1] %vm315, %v314
        $region44: #{tpu_custom_call.1} parent=27 // pred_fallthru
          _
        %p317 = scmp.lt.s32.totalorder %s24, 1
        %s318 = scalar_select %p317, %s24, 1
        %p319 = scmp.lt.s32.totalorder %s25, 0
        %s320 = scalar_select %p319, %s25, 0
        %s321 = sadd.s32 %s320, %s318
        %s322 = scalar_lea.vmem %s2, %s321
        // Predicated region
        $region45: #{tpu_custom_call.1} parent=27 // pred_check
          %p323 = pneg %p118
        $region46: #{tpu_custom_call.1} parent=27 // pred_check_branch
          %325 = sbr.rel (%p323) target = $region48
        $region47: #{tpu_custom_call.1} parent=27 // pred_region
          _
        $region48: #{tpu_custom_call.1} parent=27 // pred_fallthru
          _
      $region28: #{tpu_custom_call.1} parent=5 // pred_fallthru
        _
      %p326 = scmp.le.s32.totalorder 2, %s14
      // Predicated region
      $region49: #{tpu_custom_call.1} parent=5 // pred_check
        %p327 = pneg %p326
      $region50: #{tpu_custom_call.1} parent=5 // pred_check_branch
        %329 = sbr.rel (%p327) target = $region52
      $region51: #{tpu_custom_call.1} parent=5 // pred_region
        %s330 = ssub.s32 %s14, 2
        // Predicated region
        $region53: #{tpu_custom_call.1} parent=51 // pred_check
          %p331 = pneg %p124
        $region54: #{tpu_custom_call.1} parent=51 // pred_check_branch
          %333 = sbr.rel (%p331) target = $region56
        $region55: #{tpu_custom_call.1} parent=51 // pred_region
          %p334 = scmp.lt.s32.totalorder %s27, 1
          %s335 = scalar_select %p334, %s27, 1
          %p336 = scmp.lt.s32.totalorder %s28, 0
          %s337 = scalar_select %p336, %s28, 0
          %s338 = sadd.s32 %s337, %s335
          %s339 = scalar_lea.vmem %s2, %s338
        $region56: #{tpu_custom_call.1} parent=51 // pred_fallthru
          _
      $region52: #{tpu_custom_call.1} parent=5 // pred_fallthru
        _
    $region6: #{tpu_custom_call.1} parent=1 // loop_footer
      %s18 = sadd.s32 1, %s14
    $region7: #{tpu_custom_call.1} parent=1 // loop_footer_branch
      %13 = sbr.rel target = $region3
    $region8: #{tpu_custom_call.1} parent=1 // loop_exit
      _
    %340 = vsyncpa [#allocation4], 1
    %s341 = scalar_lea.sflag [#allocation4], 1
    %342 = vsyncpa %s341, 1
    %343 = vsyncpa [#allocation6], 1
    %s344 = scalar_lea.sflag [#allocation6], 1
    %345 = vsyncpa %s344, 1

</llo_original>
